<compile_context>
chip_gen: v6e
topology: v6e:2x2x1
jax: 0.10.0
libtpu: 0.0.40
codegen_flags: <defaults>
</compile_context>

<pallas_src>
import functools

import jax
import jax.numpy as jnp
from jax import lax
from jax.experimental import pallas as pl
from jax.experimental.pallas import tpu as pltpu

EPS = 1e-5
_VMEM_LIMIT = 32 * 1024 * 1024   # explicit scoped-VMEM budget (v5e/v7x safe)


# --------------------------- weight preprocessing ---------------------------
def _banded_conv_weight(w, width):
    """[3,3,Cin,Cout] conv weight -> [3*W*Cin, W*Cout] banded matrix.

    K ordered (kh, wi, ci). The kw taps AND the left/right zero padding are
    folded into the band (clipped at wi=0 / wi=W-1), so the kernel operand is
    just the three row-shifted copies of the unpadded lane-dense input.
    # TODO(synk): at real ResNet widths (W=56, C=64) the band is only 3/W
    # dense; switch to per-kw lane shifts (pltpu.roll) against compact
    # [Cin,Cout] weights, or W-tiling, to avoid wasted MXU FLOPs / VMEM.
    """
    kh, kw, cin, cout = w.shape
    # sel[k, wi, wo] = 1  iff  wi == wo + k - 1  (padding=1, clipped at edges)
    sel = jnp.stack([jnp.eye(width, width, k=1 - k, dtype=w.dtype)
                     for k in range(kw)])
    big = jnp.einsum("kwv,hkio->hwivo", sel, w)     # [KH, W, Cin, W, Cout]
    return big.reshape(kh * width * cin, width * cout)


def _blockdiag_weight(ws, width):
    """[Cin,Cout] 1x1-conv weight -> block-diagonal [W*Cin, W*Cout].
    # TODO(synk): density is 1/W; at real sizes use a plain [rows,Cin]x[Cin,Cout]
    # matmul on a channel-major tile for the shortcut instead.
    """
    cin, cout = ws.shape
    eye = jnp.eye(width, dtype=ws.dtype)
    return jnp.einsum("wv,io->wivo", eye, ws).reshape(width * cin, width * cout)


# ------------------------------ kernel bodies -------------------------------
def _conv3x3_operand(x, nb, h, lanes):
    """Row-shifted (kh = 0,1,2) copies of x concatenated along lanes.

    x: [Nb, H, lanes] f32 -> [Nb*H, 3*lanes] bf16 MXU operand whose K layout
    matches _banded_conv_weight (kh major, then wi, then ci).
    """
    z = jnp.zeros((nb, 1, lanes), x.dtype)
    up = jnp.concatenate([z, x[:, :h - 1, :]], axis=1)   # input row h-1 (row pad)
    dn = jnp.concatenate([x[:, 1:, :], z], axis=1)       # input row h+1 (row pad)
    op = jnp.concatenate([up, x, dn], axis=-1)           # [Nb, H, 3*lanes]
    return op.reshape(nb * h, 3 * lanes).astype(jnp.bfloat16)


def _conv1_kernel(has_shortcut, nb, h, wci, wco, *refs):
    """Pass A: conv1 (+ 1x1 shortcut conv) + per-step BN partial sums."""
    if has_shortcut:
        x_ref, bw1_ref, bws_ref, y1_ref, ysc_ref, st_ref = refs
    else:
        x_ref, bw1_ref, y1_ref, st_ref = refs

    x = x_ref[...]                                            # [Nb, H, W*Cin]
    op = _conv3x3_operand(x, nb, h, wci)                      # one fused K matmul
    y1 = jnp.dot(op, bw1_ref[...], preferred_element_type=jnp.float32)
    y1_ref[...] = y1.reshape(nb, h, wco)

    stats = [jnp.sum(y1, axis=0, keepdims=True),
             jnp.sum(y1 * y1, axis=0, keepdims=True)]
    if has_shortcut:
        xb = x.reshape(nb * h, wci).astype(jnp.bfloat16)
        ysc = jnp.dot(xb, bws_ref[...], preferred_element_type=jnp.float32)
        ysc_ref[...] = ysc.reshape(nb, h, wco)
        stats += [jnp.sum(ysc, axis=0, keepdims=True),
                  jnp.sum(ysc * ysc, axis=0, keepdims=True)]
    st_ref[...] = jnp.concatenate(stats, axis=0)[None]        # [1, nst, W*Cout]


def _conv2_kernel(nb, h, wco, y1_ref, aff1_ref, bw2_ref, y2_ref, st_ref):
    """Pass B: bn1 apply + ReLU + conv2 + per-step BN partial sums."""
    y1 = y1_ref[...].reshape(nb * h, wco)
    h1 = jnp.maximum(y1 * aff1_ref[0:1, :] + aff1_ref[1:2, :], 0.0)
    op = _conv3x3_operand(h1.reshape(nb, h, wco), nb, h, wco)
    y2 = jnp.dot(op, bw2_ref[...], preferred_element_type=jnp.float32)
    y2_ref[...] = y2.reshape(nb, h, wco)
    st_ref[...] = jnp.concatenate(
        [jnp.sum(y2, axis=0, keepdims=True),
         jnp.sum(y2 * y2, axis=0, keepdims=True)], axis=0)[None]


def _finalize_kernel(has_shortcut, nb, h, wco, y2_ref, res_ref, aff_ref, out_ref):
    """Pass C: bn2 apply (+ bn_s apply) + residual add + ReLU."""
    y2 = y2_ref[...].reshape(nb * h, wco)
    res = res_ref[...].reshape(nb * h, wco)
    out = y2 * aff_ref[0:1, :] + aff_ref[1:2, :]
    if has_shortcut:
        out = out + res * aff_ref[2:3, :] + aff_ref[3:4, :]
    else:
        out = out + res
    out_ref[...] = jnp.maximum(out, 0.0).reshape(nb, h, wco)


# --------------------------- host-side BN folding ---------------------------
def _fold_bn(stat_sum, gamma, beta, count, width, cout):
    """[2, W*Cout] (sum, sum_sq) -> lane-dense (scale, shift), each [1, W*Cout]."""
    s = stat_sum.reshape(2, width, cout).sum(axis=1)          # [2, Cout]
    mean = s[0] / count
    var = jnp.maximum(s[1] / count - mean * mean, 0.0)        # clamp (review)
    scale = gamma.reshape(-1) * lax.rsqrt(var + EPS)
    shift = beta.reshape(-1) - mean * scale
    return jnp.tile(scale, width)[None, :], jnp.tile(shift, width)[None, :]


# --------------------------------- wrapper ----------------------------------
def basic_block_forward(x_nhwc, params, stride=1, images_per_step=1):
    # TODO(synk): stride>1 downsampling blocks are not implemented.
    assert stride == 1, "only stride=1 BasicBlocks are implemented"
    N, H, W, Cin = x_nhwc.shape
    Cout = params["w1"].shape[-1]
    assert params["w1"].shape[2] == Cin
    has_shortcut = (stride != 1) or (Cin != Cout)
    WCi, WCo = W * Cin, W * Cout
    # Lane-dense layout guard: every activation store must be a full 128-lane vst.
    assert WCo % 128 == 0, "W*Cout must be a multiple of 128 (lane-dense layout)"
    assert N % images_per_step == 0
    Nb = images_per_step                 # raise so Nb*H >= 256 at real sizes (MXU fill)
    steps = N // Nb
    nst = 4 if has_shortcut else 2
    count = float(N * H * W)

    # Tiny host/XLA-side weight massaging (once per call), bf16 for the MXU.
    bw1 = _banded_conv_weight(params["w1"], W).astype(jnp.bfloat16)
    bw2 = _banded_conv_weight(params["w2"], W).astype(jnp.bfloat16)
    x_dense = x_nhwc.reshape(N, H, WCi)            # lane-dense activation layout

    cp = pltpu.CompilerParams(dimension_semantics=("parallel",),
                              vmem_limit_bytes=_VMEM_LIMIT)

    def img_spec(lanes):
        return pl.BlockSpec((Nb, H, lanes), lambda i: (i, 0, 0))

    def const_spec(arr2d):
        return pl.BlockSpec(arr2d.shape, lambda i: (0, 0))

    st_spec = pl.BlockSpec((1, nst, WCo), lambda i: (i, 0, 0))
    st2_spec = pl.BlockSpec((1, 2, WCo), lambda i: (i, 0, 0))

    # ---- pass A: conv1 (+ shortcut conv) and BN partial statistics ----
    if has_shortcut:
        bws = _blockdiag_weight(params["ws"], W).astype(jnp.bfloat16)
        y1, ysc, st_a = pl.pallas_call(
            functools.partial(_conv1_kernel, True, Nb, H, WCi, WCo),
            grid=(steps,),
            in_specs=[img_spec(WCi), const_spec(bw1), const_spec(bws)],
            out_specs=(img_spec(WCo), img_spec(WCo), st_spec),
            out_shape=(jax.ShapeDtypeStruct((N, H, WCo), jnp.float32),
                       jax.ShapeDtypeStruct((N, H, WCo), jnp.float32),
                       jax.ShapeDtypeStruct((steps, 4, WCo), jnp.float32)),
            compiler_params=cp,
        )(x_dense, bw1, bws)
    else:
        y1, st_a = pl.pallas_call(
            functools.partial(_conv1_kernel, False, Nb, H, WCi, WCo),
            grid=(steps,),
            in_specs=[img_spec(WCi), const_spec(bw1)],
            out_specs=(img_spec(WCo), st_spec),
            out_shape=(jax.ShapeDtypeStruct((N, H, WCo), jnp.float32),
                       jax.ShapeDtypeStruct((steps, 2, WCo), jnp.float32)),
            compiler_params=cp,
        )(x_dense, bw1)
        ysc = x_dense        # identity residual (Cin == Cout, stride == 1)

    st_a = jnp.sum(st_a, axis=0)                               # [nst, W*Cout]
    sc1, sh1 = _fold_bn(st_a[0:2], params["g1"], params["b1"], count, W, Cout)
    aff1 = jnp.concatenate([sc1, sh1], axis=0)                 # [2, W*Cout]

    # ---- pass B: bn1 apply + ReLU + conv2 and BN partial statistics ----
    y2, st_b = pl.pallas_call(
        functools.partial(_conv2_kernel, Nb, H, WCo),
        grid=(steps,),
        in_specs=[img_spec(WCo), const_spec(aff1), const_spec(bw2)],
        out_specs=(img_spec(WCo), st2_spec),
        out_shape=(jax.ShapeDtypeStruct((N, H, WCo), jnp.float32),
                   jax.ShapeDtypeStruct((steps, 2, WCo), jnp.float32)),
        compiler_params=cp,
    )(y1, aff1, bw2)

    st_b = jnp.sum(st_b, axis=0)
    sc2, sh2 = _fold_bn(st_b, params["g2"], params["b2"], count, W, Cout)
    if has_shortcut:
        scs, shs = _fold_bn(st_a[2:4], params["gs"], params["bs"], count, W, Cout)
        aff2 = jnp.concatenate([sc2, sh2, scs, shs], axis=0)   # [4, W*Cout]
    else:
        aff2 = jnp.concatenate([sc2, sh2], axis=0)             # [2, W*Cout]

    # ---- pass C: bn2 (+ bn_s) apply + residual add + ReLU ----
    out = pl.pallas_call(
        functools.partial(_finalize_kernel, has_shortcut, Nb, H, WCo),
        grid=(steps,),
        in_specs=[img_spec(WCo), img_spec(WCo), const_spec(aff2)],
        out_specs=img_spec(WCo),
        out_shape=jax.ShapeDtypeStruct((N, H, WCo), jnp.float32),
        compiler_params=cp,
    )(y2, ysc, aff2)

    # TODO(synk): when chaining blocks across a full ResNet, emit bf16 block
    # outputs to halve HBM writeback and feed the next block's MXU directly.
    return out.reshape(N, H, W, Cout)


# ----------------- pure-JAX reference (correctness check) -----------------
def _reference(x, params):
    def conv3x3(y, w):
        return lax.conv_general_dilated(
            y, w, (1, 1), [(1, 1), (1, 1)],
            dimension_numbers=("NHWC", "HWIO", "NHWC"),
            precision=lax.Precision.HIGHEST)

    def bn(y, g, b):
        mean = jnp.mean(y, axis=(0, 1, 2), keepdims=True)
        var = jnp.mean((y - mean) ** 2, axis=(0, 1, 2), keepdims=True)
        return (y - mean) * lax.rsqrt(var + EPS) * g.reshape(1, 1, 1, -1) \
            + b.reshape(1, 1, 1, -1)

    out = jax.nn.relu(bn(conv3x3(x, params["w1"]), params["g1"], params["b1"]))
    out = bn(conv3x3(out, params["w2"]), params["g2"], params["b2"])
    cin, cout = x.shape[-1], params["w1"].shape[-1]
    if cin != cout:
        sc = jnp.einsum("nhwc,cd->nhwd", x, params["ws"],
                        precision=lax.Precision.HIGHEST)
        sc = bn(sc, params["gs"], params["bs"])
    else:
        sc = x
    return jax.nn.relu(out + sc)


def init_params(key, cin, cout):
    ks = jax.random.split(key, 9)
    return {
        "w1": 0.1 * jax.random.normal(ks[0], (3, 3, cin, cout), jnp.float32),
        "g1": 1.0 + 0.1 * jax.random.normal(ks[1], (1, cout), jnp.float32),
        "b1": 0.1 * jax.random.normal(ks[2], (1, cout), jnp.float32),
        "w2": 0.1 * jax.random.normal(ks[3], (3, 3, cout, cout), jnp.float32),
        "g2": 1.0 + 0.1 * jax.random.normal(ks[4], (1, cout), jnp.float32),
        "b2": 0.1 * jax.random.normal(ks[5], (1, cout), jnp.float32),
        "ws": 0.1 * jax.random.normal(ks[6], (cin, cout), jnp.float32),
        "gs": 1.0 + 0.1 * jax.random.normal(ks[7], (1, cout), jnp.float32),
        "bs": 0.1 * jax.random.normal(ks[8], (1, cout), jnp.float32),
    }


if __name__ == "__main__":
    key = jax.random.PRNGKey(0)
    kx, kp = jax.random.split(key)

    # BasicBlock(in_planes=4, planes=8, stride=1) -> conv1x1+BN shortcut path.
    # W*Cout = 16*8 = 128 so every activation row is exactly one 128-lane vreg.
    N, Cin, H, W = 2, 4, 16, 16
    Cout = 8

    x_nchw = jax.random.normal(kx, (N, Cin, H, W), jnp.float32)  # PyTorch layout
    x_nhwc = jnp.transpose(x_nchw, (0, 2, 3, 1))                 # kernel layout

    params = init_params(kp, Cin, Cout)

    out = basic_block_forward(x_nhwc, params, stride=1, images_per_step=1)
    out = jax.block_until_ready(out)

    ref = _reference(x_nhwc, params)
    err = float(jnp.max(jnp.abs(out - ref)))
    denom = float(jnp.max(jnp.abs(ref))) + 1e-6
    rel = err / denom
    # bf16 MXU operands (f32 accumulation) vs. an all-f32 HIGHEST reference:
    # expected relative deviation is at the ~1e-3 level.
    if not (rel < 2e-2):
        raise AssertionError(
            f"Pallas kernel mismatch vs reference: max abs err={err}, rel={rel}")

    print("KERNEL_OK")
</pallas_src>

<mosaic_0001>
module attributes {stable_mosaic.version = 11 : i64} {
  func.func @_conv1_kernel(%arg0: i32, %arg1: memref<1x16x64xf32, #tpu.memory_space<vmem>>, %arg2: memref<192x128xbf16, #tpu.memory_space<vmem>>, %arg3: memref<64x128xbf16, #tpu.memory_space<vmem>>, %arg4: memref<1x16x128xf32, #tpu.memory_space<vmem>>, %arg5: memref<1x16x128xf32, #tpu.memory_space<vmem>>, %arg6: memref<1x4x128xf32, #tpu.memory_space<vmem>>) attributes {dimension_semantics = [#tpu.dimension_semantics<parallel>], iteration_bounds = array<i64: 2>, scalar_prefetch = 0 : i64, scratch_operands = 0 : i64, tpu.core_type = #tpu.core_type<tc>, window_params = [{transform_indices = @transform_0, window_bounds = array<i64: 1, 16, 64>}, {pipeline_mode = #tpu.pipeline_mode<synchronous>, transform_indices = @transform_1, window_bounds = array<i64: 192, 128>}, {pipeline_mode = #tpu.pipeline_mode<synchronous>, transform_indices = @transform_2, window_bounds = array<i64: 64, 128>}, {transform_indices = @transform_3, window_bounds = array<i64: 1, 16, 128>}, {transform_indices = @transform_4, window_bounds = array<i64: 1, 16, 128>}, {transform_indices = @transform_5, window_bounds = array<i64: 1, 4, 128>}]} {
    %c0 = arith.constant 0 : index
    %c0_0 = arith.constant 0 : index
    %c0_1 = arith.constant 0 : index
    %0 = vector.load %arg1[%c0, %c0_0, %c0_1] : memref<1x16x64xf32, #tpu.memory_space<vmem>>, vector<1x16x64xf32>
    %cst = arith.constant 0.000000e+00 : f32
    %1 = vector.broadcast %cst : f32 to vector<1x1x64xf32>
    %2 = vector.extract_strided_slice %0 {offsets = [0, 0, 0], sizes = [1, 15, 64], strides = [1, 1, 1]} : vector<1x16x64xf32> to vector<1x15x64xf32>
    %3 = tpu.concatenate %1, %2 in 1 : vector<1x1x64xf32>, vector<1x15x64xf32> -> vector<1x16x64xf32>
    %4 = vector.extract_strided_slice %0 {offsets = [0, 1, 0], sizes = [1, 15, 64], strides = [1, 1, 1]} : vector<1x16x64xf32> to vector<1x15x64xf32>
    %5 = tpu.concatenate %4, %1 in 1 : vector<1x15x64xf32>, vector<1x1x64xf32> -> vector<1x16x64xf32>
    %6 = tpu.concatenate %3, %0, %5 in 2 : vector<1x16x64xf32>, vector<1x16x64xf32>, vector<1x16x64xf32> -> vector<1x16x192xf32>
    %7 = vector.shape_cast %6 : vector<1x16x192xf32> to vector<16x192xf32>
    %8 = arith.truncf %7 : vector<16x192xf32> to vector<16x192xbf16>
    %c0_2 = arith.constant 0 : index
    %c0_3 = arith.constant 0 : index
    %9 = vector.load %arg2[%c0_2, %c0_3] : memref<192x128xbf16, #tpu.memory_space<vmem>>, vector<192x128xbf16>
    %cst_4 = arith.constant dense<0.000000e+00> : vector<16x128xf32>
    %10 = tpu.matmul %8, %9, %cst_4 {dimension_numbers = #tpu.dot_dimension_numbers<[1], [0], [0], [1], [0, 0, 1, 1], [], []>} : vector<16x192xbf16>, vector<192x128xbf16>, vector<16x128xf32> -> vector<16x128xf32>
    %11 = vector.shape_cast %10 : vector<16x128xf32> to vector<1x16x128xf32>
    %c0_5 = arith.constant 0 : index
    %c0_6 = arith.constant 0 : index
    %c0_7 = arith.constant 0 : index
    %12 = vector.load %arg4[%c0_5, %c0_6, %c0_7] : memref<1x16x128xf32, #tpu.memory_space<vmem>>, vector<1x16x128xf32>
    tpu.vector_store %arg4[%c0_5, %c0_6, %c0_7], %11 {strides = array<i32>} : memref<1x16x128xf32, #tpu.memory_space<vmem>>, vector<1x16x128xf32>,
    %cst_8 = arith.constant dense<0.000000e+00> : vector<128xf32>
    %13 = vector.multi_reduction <add>, %10, %cst_8 [0] : vector<16x128xf32> to vector<128xf32>
    %14 = vector.shape_cast %13 : vector<128xf32> to vector<1x128xf32>
    %15 = arith.mulf %10, %10 : vector<16x128xf32>
    %cst_9 = arith.constant dense<0.000000e+00> : vector<128xf32>
    %16 = vector.multi_reduction <add>, %15, %cst_9 [0] : vector<16x128xf32> to vector<128xf32>
    %17 = vector.shape_cast %16 : vector<128xf32> to vector<1x128xf32>
    %18 = vector.shape_cast %0 : vector<1x16x64xf32> to vector<16x64xf32>
    %19 = arith.truncf %18 : vector<16x64xf32> to vector<16x64xbf16>
    %c0_10 = arith.constant 0 : index
    %c0_11 = arith.constant 0 : index
    %20 = vector.load %arg3[%c0_10, %c0_11] : memref<64x128xbf16, #tpu.memory_space<vmem>>, vector<64x128xbf16>
    %cst_12 = arith.constant dense<0.000000e+00> : vector<16x128xf32>
    %21 = tpu.matmul %19, %20, %cst_12 {dimension_numbers = #tpu.dot_dimension_numbers<[1], [0], [0], [1], [0, 0, 1, 1], [], []>} : vector<16x64xbf16>, vector<64x128xbf16>, vector<16x128xf32> -> vector<16x128xf32>
    %22 = vector.shape_cast %21 : vector<16x128xf32> to vector<1x16x128xf32>
    %c0_13 = arith.constant 0 : index
    %c0_14 = arith.constant 0 : index
    %c0_15 = arith.constant 0 : index
    %23 = vector.load %arg5[%c0_13, %c0_14, %c0_15] : memref<1x16x128xf32, #tpu.memory_space<vmem>>, vector<1x16x128xf32>
    tpu.vector_store %arg5[%c0_13, %c0_14, %c0_15], %22 {strides = array<i32>} : memref<1x16x128xf32, #tpu.memory_space<vmem>>, vector<1x16x128xf32>,
    %cst_16 = arith.constant dense<0.000000e+00> : vector<128xf32>
    %24 = vector.multi_reduction <add>, %21, %cst_16 [0] : vector<16x128xf32> to vector<128xf32>
    %25 = vector.shape_cast %24 : vector<128xf32> to vector<1x128xf32>
    %26 = arith.mulf %21, %21 : vector<16x128xf32>
    %cst_17 = arith.constant dense<0.000000e+00> : vector<128xf32>
    %27 = vector.multi_reduction <add>, %26, %cst_17 [0] : vector<16x128xf32> to vector<128xf32>
    %28 = vector.shape_cast %27 : vector<128xf32> to vector<1x128xf32>
    %29 = tpu.concatenate %14, %17, %25, %28 in 0 : vector<1x128xf32>, vector<1x128xf32>, vector<1x128xf32>, vector<1x128xf32> -> vector<4x128xf32>
    %30 = vector.shape_cast %29 : vector<4x128xf32> to vector<1x4x128xf32>
    %c0_18 = arith.constant 0 : index
    %c0_19 = arith.constant 0 : index
    %c0_20 = arith.constant 0 : index
    %31 = vector.load %arg6[%c0_18, %c0_19, %c0_20] : memref<1x4x128xf32, #tpu.memory_space<vmem>>, vector<1x4x128xf32>
    tpu.vector_store %arg6[%c0_18, %c0_19, %c0_20], %30 {strides = array<i32>} : memref<1x4x128xf32, #tpu.memory_space<vmem>>, vector<1x4x128xf32>,
    return
  }
  func.func @transform_0(%arg0: i32) -> (i32, i32, i32) {
    %c0_i32 = arith.constant 0 : i32
    %c0_i32_0 = arith.constant 0 : i32
    %c0_i32_1 = arith.constant 0 : i32
    return %arg0, %c0_i32, %c0_i32_0 : i32, i32, i32
  }
  func.func @transform_1(%arg0: i32) -> (i32, i32) {
    %c0_i32 = arith.constant 0 : i32
    %c0_i32_0 = arith.constant 0 : i32
    %c0_i32_1 = arith.constant 0 : i32
    return %c0_i32, %c0_i32_0 : i32, i32
  }
  func.func @transform_2(%arg0: i32) -> (i32, i32) {
    %c0_i32 = arith.constant 0 : i32
    %c0_i32_0 = arith.constant 0 : i32
    %c0_i32_1 = arith.constant 0 : i32
    return %c0_i32, %c0_i32_0 : i32, i32
  }
  func.func @transform_3(%arg0: i32) -> (i32, i32, i32) {
    %c0_i32 = arith.constant 0 : i32
    %c0_i32_0 = arith.constant 0 : i32
    %c0_i32_1 = arith.constant 0 : i32
    return %arg0, %c0_i32, %c0_i32_0 : i32, i32, i32
  }
  func.func @transform_4(%arg0: i32) -> (i32, i32, i32) {
    %c0_i32 = arith.constant 0 : i32
    %c0_i32_0 = arith.constant 0 : i32
    %c0_i32_1 = arith.constant 0 : i32
    return %arg0, %c0_i32, %c0_i32_0 : i32, i32, i32
  }
  func.func @transform_5(%arg0: i32) -> (i32, i32, i32) {
    %c0_i32 = arith.constant 0 : i32
    %c0_i32_0 = arith.constant 0 : i32
    %c0_i32_1 = arith.constant 0 : i32
    return %arg0, %c0_i32, %c0_i32_0 : i32, i32, i32
  }
}

</mosaic_0001>

<llo_original>
// kernel: tpu_custom_call.1
$region0: #{tpu_custom_call.1}
  #allocation0 [shape = 'u32[]', space=smem, size = 0x4, offset = 0x4, fixed_abs, tag = 'smem constant byte address 0x4 - core index']
  #allocation1 [shape = 'u32[144,128]{1,0:T(1,128)}', space=vmem, size = 0x12000, scoped, tag = 'internal scratch']
  %s0 = inlined_call_operand.hbm [shape: f32[2,16,64], index: 0, kind: input, shape index: {}]
  %s1 = inlined_call_operand.hbm [shape: bf16[192,128], index: 1, kind: input, shape index: {}]
  %s2 = inlined_call_operand.hbm [shape: bf16[64,128], index: 2, kind: input, shape index: {}]
  %s3 = inlined_call_operand.hbm [shape: f32[2,16,128], index: 3, kind: output, shape index: {0}]
  %s4 = inlined_call_operand.hbm [shape: f32[2,16,128], index: 4, kind: output, shape index: {1}]
  %s5 = inlined_call_operand.hbm [shape: f32[2,4,128], index: 5, kind: output, shape index: {2}]
  %6 = xla_tuple %s3, %s4, %s5
  %s7 = sld [smem:[#allocation0]]
  $region73: #{tpu_custom_call.1} parent=0
    _
  %s9 = ssub.s32 1, %s7
  %s10 = scalar_select 0, %s9, %s7
  $region1: #{tpu_custom_call.1} parent=0
    #allocation2 [shape = 'u8[16384]{0}', space=vmem, size = 0x4000, scoped, tag = 'input window, operand 0']
    #allocation3 [shape = 's32[2]{0}', space=sflag, size = 0x8, scoped, tag = 'scoped memory for tpu_custom_call.1']
    #allocation4 [shape = 's32[2]{0}', space=sflag, size = 0x8, scoped, tag = 'scoped memory for tpu_custom_call.1']
    #allocation5 [shape = 'u8[49152]{0}', space=vmem, size = 0xc000, scoped, tag = 'input window, operand 1, single buffered']
    #allocation6 [shape = 's32[1]{0}', space=sflag, size = 0x4, scoped, tag = 'scoped memory for tpu_custom_call.1']
    #allocation7 [shape = 'u8[16384]{0}', space=vmem, size = 0x4000, scoped, tag = 'input window, operand 2, single buffered']
    #allocation8 [shape = 'u8[16384]{0}', space=vmem, size = 0x4000, scoped, tag = 'output window, operand 0']
    #allocation9 [shape = 'u8[16384]{0}', space=vmem, size = 0x4000, scoped, tag = 'output window, operand 1']
    #allocation10 [shape = 's32[2]{0}', space=sflag, size = 0x8, scoped, tag = 'scoped memory for tpu_custom_call.1']
    #allocation11 [shape = 'u8[4096]{0}', space=vmem, size = 0x1000, scoped, tag = 'output window, operand 2']
    %11 = vsyncpa [#allocation3], 0
    %s12 = scalar_lea.sflag [#allocation3], 1
    %13 = vsyncpa %s12, 0
    %14 = vsyncpa [#allocation6], 0
    %15 = vsyncpa [#allocation4], 0
    %s16 = scalar_lea.sflag [#allocation4], 1
    %17 = vsyncpa %s16, 0
    %18 = vsyncpa [#allocation10], 0
    %s19 = scalar_lea.sflag [#allocation10], 1
    %20 = vsyncpa %s19, 0
    loop: start=0, step=1, limit=4
    $region2: #{tpu_custom_call.1} parent=1 // loop_pre_header
      _
    $region3: #{tpu_custom_call.1} parent=1 // loop_header
      %s22 = sphi 0, %s26
      %p23 = scmp.ge.s32.totalorder %s22, 4
      %s32 = sphi 0, %s34
      %s35 = sphi 0, %s32
      %s36 = sphi 0, %s35
      %s52 = sphi 0, %s36
      %s56 = sphi 0, %s56
      %s58 = sphi 0, %s56
      %s59 = sphi 0, %s58
      %s73 = sphi 0, %s59
      %s77 = sphi 0, %s77
      %s79 = sphi 0, %s77
      %s80 = sphi 0, %s79
      %s94 = sphi 0, %s80
      %s100 = sphi 0, %s102
      %s103 = sphi 0, %s100
      %s104 = sphi 0, %s103
      %s120 = sphi 0, %s104
      %s126 = sphi 0, %s128
      %s129 = sphi 0, %s126
      %s130 = sphi 0, %s129
      %s146 = sphi 0, %s130
      %s152 = sphi 0, %s154
      %s155 = sphi 0, %s152
      %s156 = sphi 0, %s155
      %s172 = sphi 0, %s156
    $region4: #{tpu_custom_call.1} parent=1 // loop_header_branch
      %25 = sbr.rel (%p23) target = $region8
    $region5: #{tpu_custom_call.1} parent=1 // loop_body
      %s27 = ssub.s32 %s22, 1
      %s28 = ssub.s32 %s22, 2
      %s29 = sadd.s32 %s22, 1
      %s30 = ssub.s32 %s22, %s29
      %p31 = scmp.eq.s32.totalorder %s30, 0
      %s33 = sadd.s32 %s32, 1
      %s34 = scalar_select %p31, %s32, %s33
      %p37 = pneg %p31
      %p38 = scmp.eq.s32.totalorder %s22, 1
      %p39 = por %p37, %p38
      %p40 = scmp.ne.s32.totalorder %s32, %s35
      %p41 = scmp.eq.s32.totalorder %s22, 0
      %p42 = por %p40, %p41
      %p43 = scmp.ne.s32.totalorder %s32, %s35
      %p44 = scmp.eq.s32.totalorder %s27, 1
      %p45 = por %p43, %p44
      %p46 = scmp.ne.s32.totalorder %s35, %s36
      %p47 = scmp.eq.s32.totalorder %s27, 0
      %p48 = por %p46, %p47
      %p49 = scmp.ne.s32.totalorder %s35, %s36
      %p50 = scmp.eq.s32.totalorder %s28, 1
      %p51 = por %p49, %p50
      %p53 = scmp.ne.s32.totalorder %s36, %s52
      %p54 = scmp.eq.s32.totalorder %s28, 0
      %p55 = por %p53, %p54
      %s57 = sadd.s32 %s56, 1
      %p60 = scmp.eq.s32.totalorder %s22, 1
      %p61 = scmp.ne.s32.totalorder %s56, %s58
      %p62 = scmp.eq.s32.totalorder %s22, 0
      %p63 = por %p61, %p62
      %p64 = scmp.ne.s32.totalorder %s56, %s58
      %p65 = scmp.eq.s32.totalorder %s27, 1
      %p66 = por %p64, %p65
      %p67 = scmp.ne.s32.totalorder %s58, %s59
      %p68 = scmp.eq.s32.totalorder %s27, 0
      %p69 = por %p67, %p68
      %p70 = scmp.ne.s32.totalorder %s58, %s59
      %p71 = scmp.eq.s32.totalorder %s28, 1
      %p72 = por %p70, %p71
      %p74 = scmp.ne.s32.totalorder %s59, %s73
      %p75 = scmp.eq.s32.totalorder %s28, 0
      %p76 = por %p74, %p75
      %s78 = sadd.s32 %s77, 1
      %p81 = scmp.eq.s32.totalorder %s22, 1
      %p82 = scmp.ne.s32.totalorder %s77, %s79
      %p83 = scmp.eq.s32.totalorder %s22, 0
      %p84 = por %p82, %p83
      %p85 = scmp.ne.s32.totalorder %s77, %s79
      %p86 = scmp.eq.s32.totalorder %s27, 1
      %p87 = por %p85, %p86
      %p88 = scmp.ne.s32.totalorder %s79, %s80
      %p89 = scmp.eq.s32.totalorder %s27, 0
      %p90 = por %p88, %p89
      %p91 = scmp.ne.s32.totalorder %s79, %s80
      %p92 = scmp.eq.s32.totalorder %s28, 1
      %p93 = por %p91, %p92
      %p95 = scmp.ne.s32.totalorder %s80, %s94
      %p96 = scmp.eq.s32.totalorder %s28, 0
      %p97 = por %p95, %p96
      %s98 = ssub.s32 %s22, %s29
      %p99 = scmp.eq.s32.totalorder %s98, 0
      %s101 = sadd.s32 %s100, 1
      %s102 = scalar_select %p99, %s100, %s101
      %p105 = pneg %p99
      %p106 = scmp.eq.s32.totalorder %s22, 1
      %p107 = por %p105, %p106
      %p108 = scmp.ne.s32.totalorder %s100, %s103
      %p109 = scmp.eq.s32.totalorder %s22, 0
      %p110 = por %p108, %p109
      %p111 = scmp.ne.s32.totalorder %s100, %s103
      %p112 = scmp.eq.s32.totalorder %s27, 1
      %p113 = por %p111, %p112
      %p114 = scmp.ne.s32.totalorder %s103, %s104
      %p115 = scmp.eq.s32.totalorder %s27, 0
      %p116 = por %p114, %p115
      %p117 = scmp.ne.s32.totalorder %s103, %s104
      %p118 = scmp.eq.s32.totalorder %s28, 1
      %p119 = por %p117, %p118
      %p121 = scmp.ne.s32.totalorder %s104, %s120
      %p122 = scmp.eq.s32.totalorder %s28, 0
      %p123 = por %p121, %p122
      %s124 = ssub.s32 %s22, %s29
      %p125 = scmp.eq.s32.totalorder %s124, 0
      %s127 = sadd.s32 %s126, 1
      %s128 = scalar_select %p125, %s126, %s127
      %p131 = pneg %p125
      %p132 = scmp.eq.s32.totalorder %s22, 1
      %p133 = por %p131, %p132
      %p134 = scmp.ne.s32.totalorder %s126, %s129
      %p135 = scmp.eq.s32.totalorder %s22, 0
      %p136 = por %p134, %p135
      %p137 = scmp.ne.s32.totalorder %s126, %s129
      %p138 = scmp.eq.s32.totalorder %s27, 1
      %p139 = por %p137, %p138
      %p140 = scmp.ne.s32.totalorder %s129, %s130
      %p141 = scmp.eq.s32.totalorder %s27, 0
      %p142 = por %p140, %p141
      %p143 = scmp.ne.s32.totalorder %s129, %s130
      %p144 = scmp.eq.s32.totalorder %s28, 1
      %p145 = por %p143, %p144
      %p147 = scmp.ne.s32.totalorder %s130, %s146
      %p148 = scmp.eq.s32.totalorder %s28, 0
      %p149 = por %p147, %p148
      %s150 = ssub.s32 %s22, %s29
      %p151 = scmp.eq.s32.totalorder %s150, 0
      %s153 = sadd.s32 %s152, 1
      %s154 = scalar_select %p151, %s152, %s153
      %p157 = pneg %p151
      %p158 = scmp.eq.s32.totalorder %s22, 1
      %p159 = por %p157, %p158
      %p160 = scmp.ne.s32.totalorder %s152, %s155
      %p161 = scmp.eq.s32.totalorder %s22, 0
      %p162 = por %p160, %p161
      %p163 = scmp.ne.s32.totalorder %s152, %s155
      %p164 = scmp.eq.s32.totalorder %s27, 1
      %p165 = por %p163, %p164
      %p166 = scmp.ne.s32.totalorder %s155, %s156
      %p167 = scmp.eq.s32.totalorder %s27, 0
      %p168 = por %p166, %p167
      %p169 = scmp.ne.s32.totalorder %s155, %s156
      %p170 = scmp.eq.s32.totalorder %s28, 1
      %p171 = por %p169, %p170
      %p173 = scmp.ne.s32.totalorder %s156, %s172
      %p174 = scmp.eq.s32.totalorder %s28, 0
      %p175 = por %p173, %p174
      %p176 = scmp.le.s32.totalorder 1, %s22
      %p177 = scmp.lt.s32.totalorder %s22, 3
      %p178 = pnand %p176, %p177
      %p179 = pneg %p178
      // Predicated region
      $region9: #{tpu_custom_call.1} parent=5 // pred_check
        _
      $region10: #{tpu_custom_call.1} parent=5 // pred_check_branch
        %181 = sbr.rel (%p178) target = $region12
      $region11: #{tpu_custom_call.1} parent=5 // pred_region
        %s182 = ssub.s32 %s22, 1
        // Predicated region
        $region13: #{tpu_custom_call.1} parent=11 // pred_check
          %p183 = pneg %p69
        $region14: #{tpu_custom_call.1} parent=11 // pred_check_branch
          %185 = sbr.rel (%p183) target = $region16
        $region15: #{tpu_custom_call.1} parent=11 // pred_region
          %s187 = ssub.s32 1536, 1536
          %188 = vsyncadd [#allocation6], %s187
          %s189 = sshll.u32 [#allocation5], 4
          %s190 = int_to_ptr.vmem [resolvable:$true] %s189
          %195 = dma.hbm_to_vmem [thread:$0]  %s1, 1536, %s190, [#allocation6], 64, 64, 4
        $region16: #{tpu_custom_call.1} parent=11 // pred_fallthru
          _
        // Predicated region
        $region17: #{tpu_custom_call.1} parent=11 // pred_check
          %p196 = pneg %p90
        $region18: #{tpu_custom_call.1} parent=11 // pred_check_branch
          %198 = sbr.rel (%p196) target = $region20
        $region19: #{tpu_custom_call.1} parent=11 // pred_region
          %s200 = ssub.s32 512, 512
          %201 = vsyncadd [#allocation6], %s200
          %s202 = sshll.u32 [#allocation7], 4
          %s203 = int_to_ptr.vmem [resolvable:$true] %s202
          %208 = dma.hbm_to_vmem [thread:$0]  %s2, 512, %s203, [#allocation6], 64, 64, 4
        $region20: #{tpu_custom_call.1} parent=11 // pred_fallthru
          _
      $region12: #{tpu_custom_call.1} parent=5 // pred_fallthru
        _
      %p209 = scmp.lt.s32.totalorder %s22, 2
      // Predicated region
      $region21: #{tpu_custom_call.1} parent=5 // pred_check
        %p210 = pneg %p209
      $region22: #{tpu_custom_call.1} parent=5 // pred_check_branch
        %212 = sbr.rel (%p210) target = $region24
      $region23: #{tpu_custom_call.1} parent=5 // pred_region
        // Predicated region
        $region25: #{tpu_custom_call.1} parent=23 // pred_check
          %p213 = pneg %p42
        $region26: #{tpu_custom_call.1} parent=23 // pred_check_branch
          %215 = sbr.rel (%p213) target = $region28
        $region27: #{tpu_custom_call.1} parent=23 // pred_region
          %s216 = sand.u32 %s32, 1
          %s217 = scalar_lea.sflag [#allocation3], %s216
          %s218 = sand.u32 %s32, 1
          %s219 = smul.addr %s218, 16
          %s220 = scalar_lea.vmem [#allocation2], %s219
          %s222 = ssub.s32 256, 256
          %223 = vsyncadd %s217, %s222
          %s224 = smul.addr %s22, 2
          %s225 = smul.addr %s224, 128
          %s226 = scalar_lea.hbm %s0, %s225
          %s227 = sshll.u32 %s220, 4
          %s228 = int_to_ptr.vmem [resolvable:$true] %s227
          %233 = dma.hbm_to_vmem [thread:$0]  %s226, 256, %s228, %s217, 128, 128, 8
        $region28: #{tpu_custom_call.1} parent=23 // pred_fallthru
          _
      $region24: #{tpu_custom_call.1} parent=5 // pred_fallthru
        _
      %p234 = scmp.le.s32.totalorder 1, %s22
      %p235 = scmp.lt.s32.totalorder %s22, 3
      %p236 = pnand %p234, %p235
      %p237 = pneg %p236
      // Predicated region
      $region29: #{tpu_custom_call.1} parent=5 // pred_check
        _
      $region30: #{tpu_custom_call.1} parent=5 // pred_check_branch
        %239 = sbr.rel (%p236) target = $region32
      $region31: #{tpu_custom_call.1} parent=5 // pred_region
        %s240 = ssub.s32 %s22, 1
        %s241 = sand.u32 %s35, 1
        %s242 = scalar_lea.sflag [#allocation3], %s241
        %s243 = sand.u32 %s35, 1
        %s244 = smul.addr %s243, 16
        %s245 = scalar_lea.vmem [#allocation2], %s244
        // Predicated region
        $region33: #{tpu_custom_call.1} parent=31 // pred_check
          %p246 = pneg %p48
        $region34: #{tpu_custom_call.1} parent=31 // pred_check_branch
          %248 = sbr.rel (%p246) target = $region36
        $region35: #{tpu_custom_call.1} parent=31 // pred_region
          %249 = dma.done %s242, 256
        $region36: #{tpu_custom_call.1} parent=31 // pred_fallthru
          _
        // Predicated region
        $region37: #{tpu_custom_call.1} parent=31 // pred_check
          %p250 = pneg %p69
        $region38: #{tpu_custom_call.1} parent=31 // pred_check_branch
          %252 = sbr.rel (%p250) target = $region40
        $region39: #{tpu_custom_call.1} parent=31 // pred_region
          %253 = dma.done [#allocation6], 1536
        $region40: #{tpu_custom_call.1} parent=31 // pred_fallthru
          _
        // Predicated region
        $region41: #{tpu_custom_call.1} parent=31 // pred_check
          %p254 = pneg %p90
        $region42: #{tpu_custom_call.1} parent=31 // pred_check_branch
          %256 = sbr.rel (%p254) target = $region44
        $region43: #{tpu_custom_call.1} parent=31 // pred_region
          %257 = dma.done [#allocation6], 512
        $region44: #{tpu_custom_call.1} parent=31 // pred_fallthru
          _
        %s258 = sand.u32 %s35, 1
        %s259 = scalar_lea.sflag [#allocation3], %s258
        %s260 = sand.u32 %s35, 1
        %s261 = smul.addr %s260, 16
        %s262 = scalar_lea.vmem [#allocation2], %s261
        %p263 = pneg %p48
        %p264 = pneg %p45
        %p265 = pneg %p69
        %p266 = pneg %p66
        %p267 = pneg %p90
        %p268 = pneg %p87
        %p269 = pneg %p116
        %p270 = pneg %p113
        %s271 = sand.u32 %s103, 1
        %s272 = scalar_lea.sflag [#allocation4], %s271
        %s273 = sand.u32 %s103, 1
        %s274 = smul.addr %s273, 16
        %s275 = scalar_lea.vmem [#allocation8], %s274
        %p276 = pneg %p142
        %p277 = pneg %p139
        %s278 = sand.u32 %s27, 1
        %s279 = scalar_lea.sflag [#allocation10], %s278
        %s280 = sand.u32 %s129, 1
        %s281 = smul.addr %s280, 16
        %s282 = scalar_lea.vmem [#allocation9], %s281
        %p283 = pneg %p168
        %p284 = pneg %p165
        %s285 = sand.u32 %s27, 1
        %s286 = scalar_lea.sflag [#allocation10], %s285
        %s287 = sand.u32 %s155, 1
        %s288 = smul.addr %s287, 4
        %s289 = scalar_lea.vmem [#allocation11], %s288
        %v291 = vld [vmem:[%s245] sm:$0xff]
        %v292 = vld [vmem:[%s245 + $0x8] sm:$0xff]
        %vm295 = vcmask 1040384
        %v296 = vrot.slane %v291, 7
        %v297 = vrot.slane %v292, 7
        %v298 = vsel %vm295, %v296, %v297
        %v301 = vsel %vm295, 0.0, %v296
        %vm302 = vcmask 1046528
        %v303 = vrot.slane %v291, 1
        %v304 = vrot.slane %v292, 1
        %v305 = vsel %vm302, %v303, %v304
        %v308 = vsel %vm302, %v304, 0.0
        %309 = vrot.lane.b32.xlu0 %v291, 64
        %v310 = vpop.permute.xlu0 %309
        %311 = vrot.lane.b32.xlu0 %v292, 64
        %v312 = vpop.permute.xlu0 %311
        %vm315 = vcmask 523264
        %v316 = vsel %vm315, %v301, %v310
        %v317 = vsel %vm315, %v298, %v312
        %v318 = vpack.c.bf16 %v317, %v316
        %v319 = vpack.c.bf16 %v308, %v305
        %v320 = vld [vmem:[#allocation5] sm:$0xf]
        %v321 = vld [vmem:[#allocation5 + $0x4] sm:$0xf]
        %v322 = vld [vmem:[#allocation5 + $0x8] sm:$0xf]
        %v323 = vld [vmem:[#allocation5 + $0xc] sm:$0xf]
        %v324 = vld [vmem:[#allocation5 + $0x10] sm:$0xf]
        %v325 = vld [vmem:[#allocation5 + $0x14] sm:$0xf]
        %v326 = vld [vmem:[#allocation5 + $0x18] sm:$0xf]
        %v327 = vld [vmem:[#allocation5 + $0x1c] sm:$0xf]
        %v328 = vld [vmem:[#allocation5 + $0x20] sm:$0xf]
        %v329 = vld [vmem:[#allocation5 + $0x24] sm:$0xf]
        %v330 = vld [vmem:[#allocation5 + $0x28] sm:$0xf]
        %v331 = vld [vmem:[#allocation5 + $0x2c] sm:$0xf]
        %v332 = vld [vmem:[#allocation5 + $0x30] sm:$0xf]
        %v333 = vld [vmem:[#allocation5 + $0x34] sm:$0xf]
        %v334 = vld [vmem:[#allocation5 + $0x38] sm:$0xf]
        %v335 = vld [vmem:[#allocation5 + $0x3c] sm:$0xf]
        %v336 = vld [vmem:[#allocation5 + $0x40] sm:$0xf]
        %v337 = vld [vmem:[#allocation5 + $0x44] sm:$0xf]
        %v338 = vld [vmem:[#allocation5 + $0x48] sm:$0xf]
        %v339 = vld [vmem:[#allocation5 + $0x4c] sm:$0xf]
        %v340 = vld [vmem:[#allocation5 + $0x50] sm:$0xf]
        %v341 = vld [vmem:[#allocation5 + $0x54] sm:$0xf]
        %v342 = vld [vmem:[#allocation5 + $0x58] sm:$0xf]
        %v343 = vld [vmem:[#allocation5 + $0x5c] sm:$0xf]
        %v368 = vunpack.c.l.b16 %v320
        %v369 = vunpack.c.l.b16 %v321
        %v370 = vunpack.c.l.b16 %v322
        %v371 = vunpack.c.l.b16 %v323
        %v372 = vunpack.c.l.b16 %v324
        %v373 = vunpack.c.l.b16 %v325
        %v374 = vunpack.c.l.b16 %v326
        %v375 = vunpack.c.l.b16 %v327
        %v376 = vunpack.c.l.b16 %v328
        %v377 = vunpack.c.l.b16 %v329
        %v378 = vunpack.c.l.b16 %v330
        %v379 = vunpack.c.l.b16 %v331
        %v380 = vunpack.c.l.b16 %v332
        %v381 = vunpack.c.l.b16 %v333
        %v382 = vunpack.c.l.b16 %v334
        %v383 = vunpack.c.l.b16 %v335
        %v384 = vunpack.c.l.b16 %v336
        %v385 = vunpack.c.l.b16 %v337
        %v386 = vunpack.c.l.b16 %v338
        %v387 = vunpack.c.l.b16 %v339
        %v388 = vunpack.c.l.b16 %v340
        %v389 = vunpack.c.l.b16 %v341
        %v390 = vunpack.c.l.b16 %v342
        %v391 = vunpack.c.l.b16 %v343
        %v392 = vpack.c.b16 %v369, %v368
        %v393 = vpack.c.b16 %v371, %v370
        %v394 = vpack.c.b16 %v373, %v372
        %v395 = vpack.c.b16 %v375, %v374
        %v396 = vpack.c.b16 %v377, %v376
        %v397 = vpack.c.b16 %v379, %v378
        %v398 = vpack.c.b16 %v381, %v380
        %v399 = vpack.c.b16 %v383, %v382
        %v400 = vpack.c.b16 %v385, %v384
        %v401 = vpack.c.b16 %v387, %v386
        %v402 = vpack.c.b16 %v389, %v388
        %v403 = vpack.c.b16 %v391, %v390
        %v417 = vsel %vm315, %v319, 0
        %419 = vmatprep.subr.bf16.mxu0 0
        %420 = vmatpush1.bf16.msra.mxu0 %v399
        %421 = vmatprep.subr.bf16.mxu0 0
        %422 = vmatpush1.bf16.msra.mxu0 %v398
        %423 = vmatprep.subr.bf16.mxu0 0
        %424 = vmatpush1.bf16.msra.mxu0 %v397
        %425 = vmatprep.subr.bf16.mxu0 0
        %426 = vmatpush1.bf16.msra.mxu0 %v396
        %427 = vmatprep.subr.bf16.mxu0 0
        %428 = vmatpush1.bf16.msra.mxu0 %v395
        %429 = vmatprep.subr.bf16.mxu0 0
        %430 = vmatpush1.bf16.msra.mxu0 %v394
        %431 = vmatprep.subr.bf16.mxu0 0
        %432 = vmatpush1.bf16.msra.mxu0 %v393
        %433 = vmatprep.subr.bf16.mxu0 0
        %434 = vmatpush1.bf16.msra.mxu0 %v392
        %435 = vmatprep.subr.bf16.mxu0 0
        %436 = vmatpush2.bf16.msra.mxu0 0
        %437 = vmatprep.subr.bf16.mxu0 0
        %438 = vmatpush2.bf16.msra.mxu0 0
        %439 = vmatprep.subr.bf16.mxu0 0
        %440 = vmatpush2.bf16.msra.mxu0 0
        %441 = vmatprep.subr.bf16.mxu0 0
        %442 = vmatpush2.bf16.msra.mxu0 0
        %443 = vmatprep.subr.bf16.mxu0 0
        %444 = vmatpush2.bf16.msra.mxu0 %v403
        %445 = vmatprep.subr.bf16.mxu0 0
        %446 = vmatpush2.bf16.msra.mxu0 %v402
        %447 = vmatprep.subr.bf16.mxu0 0
        %448 = vmatpush2.bf16.msra.mxu0 %v401
        %449 = vmatprep.subr.bf16.mxu0 0
        %450 = vmatpush2.bf16.msra.mxu0 %v400
        %451 = vmatprep.mubr.bf16.mxu0 %v417
        %452 = vmatmul.mubr.bf16.gmra.mxu0 %v318
        %v453 = vpop.f32.mrf.mxu0
        %v454 = vadd.f32 0.0, %v453
        %v455 = vpop.f32.mrf.mxu0
        %v456 = vpop.f32.mrf.mxu0
        %v457 = vadd.f32 0.0, %v456
        %v458 = vpop.f32.mrf.mxu0
        %459 = vdwg.mxu0
        %460 = vst [vmem:[%s275] sm:$0xff] %v454
        %461 = vst [vmem:[%s275 + $0x8] sm:$0xff] %v457
        %v462 = vadd.f32 %v454, %v457
        %v463 = vrot.slane %v462, 4
        %v464 = vadd.f32 %v462, %v463
        %v465 = vrot.slane %v464, 2
        %v466 = vadd.f32 %v464, %v465
        %v467 = vrot.slane %v466, 1
        %v468 = vadd.f32 %v466, %v467
        %v469 = vmul.f32 %v454, %v454
        %v470 = vmul.f32 %v457, %v457
        %v471 = vadd.f32 %v469, %v470
        %v472 = vrot.slane %v471, 4
        %v473 = vadd.f32 %v471, %v472
        %v474 = vrot.slane %v473, 2
        %v475 = vadd.f32 %v473, %v474
        %v476 = vrot.slane %v475, 1
        %v477 = vadd.f32 %v475, %v476
        %v478 = vpack.c.bf16 %v292, %v291
        %v479 = vld [vmem:[#allocation7] sm:$0xf]
        %v480 = vld [vmem:[#allocation7 + $0x4] sm:$0xf]
        %v481 = vld [vmem:[#allocation7 + $0x8] sm:$0xf]
        %v482 = vld [vmem:[#allocation7 + $0xc] sm:$0xf]
        %v483 = vld [vmem:[#allocation7 + $0x10] sm:$0xf]
        %v484 = vld [vmem:[#allocation7 + $0x14] sm:$0xf]
        %v485 = vld [vmem:[#allocation7 + $0x18] sm:$0xf]
        %v486 = vld [vmem:[#allocation7 + $0x1c] sm:$0xf]
        %v495 = vunpack.c.l.b16 %v479
        %v496 = vunpack.c.l.b16 %v480
        %v497 = vunpack.c.l.b16 %v481
        %v498 = vunpack.c.l.b16 %v482
        %v499 = vunpack.c.l.b16 %v483
        %v500 = vunpack.c.l.b16 %v484
        %v501 = vunpack.c.l.b16 %v485
        %v502 = vunpack.c.l.b16 %v486
        %v503 = vpack.c.b16 %v496, %v495
        %v504 = vpack.c.b16 %v498, %v497
        %v505 = vpack.c.b16 %v500, %v499
        %v506 = vpack.c.b16 %v502, %v501
        %v512 = vsel %vm315, %v478, 0
        %514 = vmatprep.subr.bf16.mxu0 0
        %515 = vmatpush1.bf16.msra.mxu0 0
        %516 = vmatprep.subr.bf16.mxu0 0
        %517 = vmatpush1.bf16.msra.mxu0 0
        %518 = vmatprep.subr.bf16.mxu0 0
        %519 = vmatpush1.bf16.msra.mxu0 0
        %520 = vmatprep.subr.bf16.mxu0 0
        %521 = vmatpush1.bf16.msra.mxu0 0
        %522 = vmatprep.subr.bf16.mxu0 0
        %523 = vmatpush1.bf16.msra.mxu0 %v506
        %524 = vmatprep.subr.bf16.mxu0 0
        %525 = vmatpush1.bf16.msra.mxu0 %v505
        %526 = vmatprep.subr.bf16.mxu0 0
        %527 = vmatpush1.bf16.msra.mxu0 %v504
        %528 = vmatprep.subr.bf16.mxu0 0
        %529 = vmatpush1.bf16.msra.mxu0 %v503
        %530 = vmatprep.subr.bf16.mxu0 0
        %531 = vmatpush2.bf16.msra.mxu0 0
        %532 = vmatprep.subr.bf16.mxu0 0
        %533 = vmatpush2.bf16.msra.mxu0 0
        %534 = vmatprep.subr.bf16.mxu0 0
        %535 = vmatpush2.bf16.msra.mxu0 0
        %536 = vmatprep.subr.bf16.mxu0 0
        %537 = vmatpush2.bf16.msra.mxu0 0
        %538 = vmatprep.subr.bf16.mxu0 0
        %539 = vmatpush2.bf16.msra.mxu0 0
        %540 = vmatprep.subr.bf16.mxu0 0
        %541 = vmatpush2.bf16.msra.mxu0 0
        %542 = vmatprep.subr.bf16.mxu0 0
        %543 = vmatpush2.bf16.msra.mxu0 0
        %544 = vmatprep.subr.bf16.mxu0 0
        %545 = vmatpush2.bf16.msra.mxu0 0
        %546 = vmatprep.mubr.bf16.mxu0 0
        %547 = vmatmul.mubr.bf16.gmra.mxu0 %v512
        %v548 = vpop.f32.mrf.mxu0
        %v549 = vadd.f32 0.0, %v548
        %v550 = vpop.f32.mrf.mxu0
        %v551 = vpop.f32.mrf.mxu0
        %v552 = vadd.f32 0.0, %v551
        %v553 = vpop.f32.mrf.mxu0
        %554 = vdwg.mxu0
        %555 = vst [vmem:[%s282] sm:$0xff] %v549
        %556 = vst [vmem:[%s282 + $0x8] sm:$0xff] %v552
        %v557 = vadd.f32 %v549, %v552
        %v558 = vrot.slane %v557, 4
        %v559 = vadd.f32 %v557, %v558
        %v560 = vrot.slane %v559, 2
        %v561 = vadd.f32 %v559, %v560
        %v562 = vrot.slane %v561, 1
        %v563 = vadd.f32 %v561, %v562
        %v564 = vmul.f32 %v549, %v549
        %v565 = vmul.f32 %v552, %v552
        %v566 = vadd.f32 %v564, %v565
        %v567 = vrot.slane %v566, 4
        %v568 = vadd.f32 %v566, %v567
        %v569 = vrot.slane %v568, 2
        %v570 = vadd.f32 %v568, %v569
        %v571 = vrot.slane %v570, 1
        %v572 = vadd.f32 %v570, %v571
        %v573 = vsel %vm295, %v468, %v477
        %vm574 = vcmask 1041408
        %v575 = vsel %vm574, %v573, %v563
        %vm576 = vcmask 1042432
        %v577 = vsel %vm576, %v575, %v572
        %578 = vst [vmem:[%s289] sm:$0xf] %v577
        %s579 = sand.u32 %s103, 1
        %s580 = scalar_lea.sflag [#allocation4], %s579
        %s581 = sand.u32 %s103, 1
        %s582 = smul.addr %s581, 16
        %s583 = scalar_lea.vmem [#allocation8], %s582
        %s584 = sand.u32 %s27, 1
        %s585 = scalar_lea.sflag [#allocation10], %s584
        %s586 = sand.u32 %s129, 1
        %s587 = smul.addr %s586, 16
        %s588 = scalar_lea.vmem [#allocation9], %s587
        %s589 = sand.u32 %s27, 1
        %s590 = scalar_lea.sflag [#allocation10], %s589
        %s591 = sand.u32 %s155, 1
        %s592 = smul.addr %s591, 4
        %s593 = scalar_lea.vmem [#allocation11], %s592
        // Predicated region
        $region45: #{tpu_custom_call.1} parent=31 // pred_check
          %p594 = pneg %p113
        $region46: #{tpu_custom_call.1} parent=31 // pred_check_branch
          %596 = sbr.rel (%p594) target = $region48
        $region47: #{tpu_custom_call.1} parent=31 // pred_region
          %s598 = ssub.s32 256, 256
          %599 = vsyncadd %s580, %s598
          %s600 = smul.addr %s27, 2
          %s601 = smul.addr %s600, 128
          %s602 = scalar_lea.hbm %s3, %s601
          %s603 = sshll.u32 %s583, 4
          %s604 = int_to_ptr.vmem [resolvable:$true] %s603
          %609 = dma.vmem_to_hbm [thread:$0]  %s604, 256, %s602, %s580, 128, 128, 8
        $region48: #{tpu_custom_call.1} parent=31 // pred_fallthru
          _
        // Predicated region
        $region49: #{tpu_custom_call.1} parent=31 // pred_check
          %p610 = pneg %p139
        $region50: #{tpu_custom_call.1} parent=31 // pred_check_branch
          %612 = sbr.rel (%p610) target = $region52
        $region51: #{tpu_custom_call.1} parent=31 // pred_region
          %s614 = ssub.s32 256, 256
          %615 = vsyncadd %s585, %s614
          %s616 = smul.addr %s27, 2
          %s617 = smul.addr %s616, 128
          %s618 = scalar_lea.hbm %s4, %s617
          %s619 = sshll.u32 %s588, 4
          %s620 = int_to_ptr.vmem [resolvable:$true] %s619
          %625 = dma.vmem_to_hbm [thread:$0]  %s620, 256, %s618, %s585, 128, 128, 8
        $region52: #{tpu_custom_call.1} parent=31 // pred_fallthru
          _
        // Predicated region
        $region53: #{tpu_custom_call.1} parent=31 // pred_check
          %p626 = pneg %p165
        $region54: #{tpu_custom_call.1} parent=31 // pred_check_branch
          %628 = sbr.rel (%p626) target = $region56
        $region55: #{tpu_custom_call.1} parent=31 // pred_region
          %s630 = ssub.s32 64, 64
          %631 = vsyncadd %s590, %s630
          %s632 = smul.addr %s27, 64
          %s633 = scalar_lea.hbm %s5, %s632
          %s635 = sshll.u32 %s593, 4
          %s636 = int_to_ptr.vmem [resolvable:$true] %s635
          %638 = dma.vmem_to_hbm [thread:$0]  %s636, 64, %s633, %s590
        $region56: #{tpu_custom_call.1} parent=31 // pred_fallthru
          _
      $region32: #{tpu_custom_call.1} parent=5 // pred_fallthru
        _
      %p639 = scmp.le.s32.totalorder 2, %s22
      // Predicated region
      $region57: #{tpu_custom_call.1} parent=5 // pred_check
        %p640 = pneg %p639
      $region58: #{tpu_custom_call.1} parent=5 // pred_check_branch
        %642 = sbr.rel (%p640) target = $region60
      $region59: #{tpu_custom_call.1} parent=5 // pred_region
        %s643 = ssub.s32 %s22, 2
        // Predicated region
        $region61: #{tpu_custom_call.1} parent=59 // pred_check
          %p644 = pneg %p119
        $region62: #{tpu_custom_call.1} parent=59 // pred_check_branch
          %646 = sbr.rel (%p644) target = $region64
        $region63: #{tpu_custom_call.1} parent=59 // pred_region
          %s647 = sand.u32 %s104, 1
          %s648 = scalar_lea.sflag [#allocation4], %s647
          %s649 = sand.u32 %s104, 1
          %s650 = smul.addr %s649, 16
          %s651 = scalar_lea.vmem [#allocation8], %s650
          %652 = dma.done %s648, 256
        $region64: #{tpu_custom_call.1} parent=59 // pred_fallthru
          _
        // Predicated region
        $region65: #{tpu_custom_call.1} parent=59 // pred_check
          %p653 = pneg %p145
        $region66: #{tpu_custom_call.1} parent=59 // pred_check_branch
          %655 = sbr.rel (%p653) target = $region68
        $region67: #{tpu_custom_call.1} parent=59 // pred_region
          %s656 = sand.u32 %s28, 1
          %s657 = scalar_lea.sflag [#allocation10], %s656
          %s658 = sand.u32 %s130, 1
          %s659 = smul.addr %s658, 16
          %s660 = scalar_lea.vmem [#allocation9], %s659
          %661 = dma.done %s657, 256
        $region68: #{tpu_custom_call.1} parent=59 // pred_fallthru
          _
        // Predicated region
        $region69: #{tpu_custom_call.1} parent=59 // pred_check
          %p662 = pneg %p171
        $region70: #{tpu_custom_call.1} parent=59 // pred_check_branch
          %664 = sbr.rel (%p662) target = $region72
        $region71: #{tpu_custom_call.1} parent=59 // pred_region
          %s665 = sand.u32 %s28, 1
          %s666 = scalar_lea.sflag [#allocation10], %s665
          %s667 = sand.u32 %s156, 1
          %s668 = smul.addr %s667, 4
          %s669 = scalar_lea.vmem [#allocation11], %s668
          %670 = dma.done %s666, 64
        $region72: #{tpu_custom_call.1} parent=59 // pred_fallthru
          _
      $region60: #{tpu_custom_call.1} parent=5 // pred_fallthru
        _
    $region6: #{tpu_custom_call.1} parent=1 // loop_footer
      %s26 = sadd.s32 1, %s22
    $region7: #{tpu_custom_call.1} parent=1 // loop_footer_branch
      %21 = sbr.rel target = $region3
    $region8: #{tpu_custom_call.1} parent=1 // loop_exit
      _
    %671 = vsyncpa [#allocation3], 1
    %s672 = scalar_lea.sflag [#allocation3], 1
    %673 = vsyncpa %s672, 1
    %674 = vsyncpa [#allocation6], 1
    %675 = vsyncpa [#allocation4], 1
    %s676 = scalar_lea.sflag [#allocation4], 1
    %677 = vsyncpa %s676, 1
    %678 = vsyncpa [#allocation10], 1
    %s679 = scalar_lea.sflag [#allocation10], 1
    %680 = vsyncpa %s679, 1

</llo_original>
